<compile_context>
chip_gen: v7x
topology: tpu7x:2x2x1
jax: 0.10.0
libtpu: 0.0.40
codegen_flags: <defaults>
</compile_context>

<pallas_src>
import jax
import jax.numpy as jnp
from jax import lax
from jax.experimental import pallas as pl
from jax.experimental.pallas import tpu as pltpu

EPS = 1e-5
LANE = 128  # padded feature width for hidden layers (lane-dense)


def dqn_kernel(x_ref, w_ref, v_ref, o_ref):
    # x_ref : (B, in_size)      f32 input activations (no wrapper pad)
    # w_ref : (4, LANE, LANE)   bf16 packed zero-padded weights [W1, W2, W3, W4]
    # v_ref : (8, LANE)         f32: rows 0..3 = b1..b4, row 4 = gamma, row 5 = beta
    # o_ref : (B, out_size)     f32 real-shaped output
    in_size = x_ref.shape[1]
    out_size = o_ref.shape[1]
    batch = x_ref.shape[0]

    b1 = v_ref[0:1, :]
    b2 = v_ref[1:2, :]
    b3 = v_ref[2:3, :]
    b4 = v_ref[3:4, :]
    gamma = v_ref[4:5, :]
    beta = v_ref[5:6, :]

    # fc1 + relu : contract only the real in_size rows of W1 (sub-tile load,
    # in_size=16 is pack-aligned for bf16) -> no wrapper-side input padding.
    x = x_ref[...].astype(jnp.bfloat16)
    h1 = jnp.maximum(
        jnp.dot(x, w_ref[0, :in_size, :], preferred_element_type=jnp.float32) + b1,
        0.0)
    # fc2 + relu
    h2 = jnp.maximum(
        jnp.dot(h1.astype(jnp.bfloat16), w_ref[1],
                preferred_element_type=jnp.float32) + b2, 0.0)
    # fc3
    h3 = jnp.dot(h2.astype(jnp.bfloat16), w_ref[2],
                 preferred_element_type=jnp.float32) + b3

    # BatchNorm1d (training mode: batch stats, biased variance).
    # Padded feature columns are identically zero -> mean=var=0, gamma_pad=0,
    # so they stay zero and never pollute the real lanes.
    inv_b = 1.0 / batch
    s1 = jnp.sum(h3, axis=0, keepdims=True)          # concurrent reductions
    s2 = jnp.sum(h3 * h3, axis=0, keepdims=True)
    mean = s1 * inv_b
    var = jnp.maximum(s2 * inv_b - mean * mean, 0.0)  # clamp f32 cancellation
    centered = h3 - mean                              # overlaps with rsqrt below
    scale = gamma * lax.rsqrt(var + EPS)              # EUP slot
    h3bn = jnp.maximum(centered * scale + beta, 0.0)

    # fc4 -> store only the real out_size lanes (single masked vst).
    res = jnp.dot(h3bn.astype(jnp.bfloat16), w_ref[3],
                  preferred_element_type=jnp.float32) + b4
    o_ref[...] = res[:, :out_size]


def dqn_forward(x, w_slab, v_slab, out_size):
    """x: (batch, in_size) f32; (w_slab, v_slab) from pack_params."""
    batch, in_size = x.shape
    vmem = pl.BlockSpec(memory_space=pltpu.MemorySpace.VMEM)

    flops = 2 * batch * LANE * (in_size + 3 * LANE) + 12 * batch * LANE
    bytes_accessed = int(x.size * 4 + w_slab.size * w_slab.dtype.itemsize
                         + v_slab.size * 4 + batch * out_size * 4)

    # VMEM budget from actual residents (params + all activations live at once
    # in this gridless kernel); scales with batch, stays far below v7x 64 MiB.
    resident = int(w_slab.size * w_slab.dtype.itemsize + v_slab.size * 4
                   + batch * (in_size + 6 * LANE + out_size) * 4)
    vmem_limit = min(2 * resident + (2 << 20), 48 << 20)

    return pl.pallas_call(
        dqn_kernel,
        out_shape=jax.ShapeDtypeStruct((batch, out_size), jnp.float32),
        in_specs=[vmem, vmem, vmem],
        out_specs=vmem,
        cost_estimate=pl.CostEstimate(
            flops=flops, transcendentals=LANE, bytes_accessed=bytes_accessed),
        compiler_params=pltpu.CompilerParams(vmem_limit_bytes=vmem_limit),
    )(x, w_slab, v_slab)


def init_params(key, input_size, output_size, hidden=50):
    # Deterministic init mimicking PyTorch Linear default U[-1/sqrt(fan_in), +].
    def linear(key, fan_in, fan_out):
        kw, kb = jax.random.split(key)
        bound = 1.0 / jnp.sqrt(fan_in)
        w = jax.random.uniform(kw, (fan_in, fan_out), jnp.float32, -bound, bound)
        b = jax.random.uniform(kb, (1, fan_out), jnp.float32, -bound, bound)
        return w, b

    k1, k2, k3, k4 = jax.random.split(key, 4)
    w1, b1 = linear(k1, input_size, hidden)
    w2, b2 = linear(k2, hidden, hidden)
    w3, b3 = linear(k3, hidden, hidden)
    w4, b4 = linear(k4, hidden, output_size)
    gamma = jnp.ones((1, hidden), jnp.float32)   # BN weight
    beta = jnp.zeros((1, hidden), jnp.float32)   # BN bias
    return (w1, b1, w2, b2, w3, b3, gamma, beta, w4, b4)


def pack_params(params):
    """Zero-pad every weight to (LANE, LANE) in bf16 and every vector to
    (1, LANE) in f32, packed into two slabs (2 parameter operands, done once).
    Note: input_size should be a multiple of 16 for a clean bf16 sub-tile slice
    of W1 in the kernel (16 here)."""
    (w1, b1, w2, b2, w3, b3, gamma, beta, w4, b4) = params
    out_size = w4.shape[1]

    def pad_w(w):
        r, c = w.shape
        return jnp.pad(w, ((0, LANE - r), (0, LANE - c))).astype(jnp.bfloat16)

    def pad_v(v):
        v = v.reshape(1, -1)
        return jnp.pad(v, ((0, 0), (0, LANE - v.shape[-1])))

    w_slab = jnp.stack([pad_w(w1), pad_w(w2), pad_w(w3), pad_w(w4)])  # (4,128,128) bf16
    zeros = jnp.zeros((1, LANE), jnp.float32)
    v_slab = jnp.concatenate(
        [pad_v(b1), pad_v(b2), pad_v(b3), pad_v(b4),
         pad_v(gamma), pad_v(beta), zeros, zeros], axis=0)            # (8,128) f32
    return (w_slab, v_slab), out_size


def dqn_reference(x, params, quantized):
    """quantized=True mirrors the kernel's bf16 weight/activation matmul inputs
    and E[x^2]-mean^2 variance; quantized=False is the pure-f32 module math."""
    (w1, b1, w2, b2, w3, b3, gamma, beta, w4, b4) = params

    def mm(a, w):
        if quantized:
            return jnp.dot(a.astype(jnp.bfloat16), w.astype(jnp.bfloat16),
                           preferred_element_type=jnp.float32)
        return jnp.dot(a, w, preferred_element_type=jnp.float32)

    h1 = jnp.maximum(mm(x, w1) + b1, 0.0)
    h2 = jnp.maximum(mm(h1, w2) + b2, 0.0)
    h3 = mm(h2, w3) + b3
    mean = jnp.mean(h3, axis=0, keepdims=True)
    if quantized:
        var = jnp.maximum(jnp.mean(h3 * h3, axis=0, keepdims=True) - mean * mean,
                          0.0)
    else:
        var = jnp.mean((h3 - mean) ** 2, axis=0, keepdims=True)
    h3bn = jnp.maximum((h3 - mean) * (gamma * lax.rsqrt(var + EPS)) + beta, 0.0)
    return mm(h3bn, w4) + b4


if __name__ == "__main__":
    key = jax.random.PRNGKey(0)
    k_param, k_x = jax.random.split(key)

    batch, input_size, output_size = 8, 16, 4
    params = init_params(k_param, input_size, output_size)
    (w_slab, v_slab), out_size = pack_params(params)
    x = jax.random.normal(k_x, (batch, input_size), jnp.float32)

    fwd = jax.jit(dqn_forward, static_argnums=3)
    out = jax.block_until_ready(fwd(x, w_slab, v_slab, out_size))
    assert out.shape == (batch, output_size), out.shape

    # (1) Tight kernel-correctness check against a JAX reference that mirrors
    #     the kernel's bf16 matmul inputs exactly (only accumulation-order
    #     differences remain, amplified slightly by the BatchNorm).
    ref_q = dqn_reference(x, params, quantized=True)
    assert jnp.allclose(out, ref_q, atol=1e-3, rtol=1e-3), \
        float(jnp.max(jnp.abs(out - ref_q)))

    # (2) Semantics envelope vs the pure-f32 PyTorch forward: the only
    #     deviation is the bf16 weight/activation storage adopted per the
    #     performance review; bound it coarsely.
    ref_f32 = dqn_reference(x, params, quantized=False)
    max_diff = float(jnp.max(jnp.abs(out - ref_f32)))
    assert max_diff < 1e-1, max_diff

    print("KERNEL_OK")
</pallas_src>

<mosaic_0001>
module attributes {stable_mosaic.version = 11 : i64} {
  func.func @dqn_kernel(%arg0: memref<8x16xf32, #tpu.memory_space<vmem>>, %arg1: memref<4x128x128xbf16, #tpu.memory_space<vmem>>, %arg2: memref<8x128xf32, #tpu.memory_space<vmem>>, %arg3: memref<8x4xf32, #tpu.memory_space<vmem>>) attributes {dimension_semantics = [], scalar_prefetch = 0 : i64, scratch_operands = 0 : i64, tpu.core_type = #tpu.core_type<tc>} {
    %c0 = arith.constant 0 : index
    %c0_0 = arith.constant 0 : index
    %0 = vector.load %arg2[%c0, %c0_0] : memref<8x128xf32, #tpu.memory_space<vmem>>, vector<1x128xf32>
    %c1 = arith.constant 1 : index
    %c0_1 = arith.constant 0 : index
    %1 = vector.load %arg2[%c1, %c0_1] : memref<8x128xf32, #tpu.memory_space<vmem>>, vector<1x128xf32>
    %c2 = arith.constant 2 : index
    %c0_2 = arith.constant 0 : index
    %2 = vector.load %arg2[%c2, %c0_2] : memref<8x128xf32, #tpu.memory_space<vmem>>, vector<1x128xf32>
    %c3 = arith.constant 3 : index
    %c0_3 = arith.constant 0 : index
    %3 = vector.load %arg2[%c3, %c0_3] : memref<8x128xf32, #tpu.memory_space<vmem>>, vector<1x128xf32>
    %c4 = arith.constant 4 : index
    %c0_4 = arith.constant 0 : index
    %4 = vector.load %arg2[%c4, %c0_4] : memref<8x128xf32, #tpu.memory_space<vmem>>, vector<1x128xf32>
    %c5 = arith.constant 5 : index
    %c0_5 = arith.constant 0 : index
    %5 = vector.load %arg2[%c5, %c0_5] : memref<8x128xf32, #tpu.memory_space<vmem>>, vector<1x128xf32>
    %c0_6 = arith.constant 0 : index
    %c0_7 = arith.constant 0 : index
    %6 = vector.load %arg0[%c0_6, %c0_7] : memref<8x16xf32, #tpu.memory_space<vmem>>, vector<8x16xf32>
    %7 = arith.truncf %6 : vector<8x16xf32> to vector<8x16xbf16>
    %c0_8 = arith.constant 0 : index
    %c0_9 = arith.constant 0 : index
    %c0_10 = arith.constant 0 : index
    %8 = vector.load %arg1[%c0_8, %c0_9, %c0_10] : memref<4x128x128xbf16, #tpu.memory_space<vmem>>, vector<1x16x128xbf16>
    %9 = vector.shape_cast %8 : vector<1x16x128xbf16> to vector<16x128xbf16>
    %cst = arith.constant dense<0.000000e+00> : vector<8x128xf32>
    %10 = tpu.matmul %7, %9, %cst {dimension_numbers = #tpu.dot_dimension_numbers<[1], [0], [0], [1], [0, 0, 1, 1], [], []>} : vector<8x16xbf16>, vector<16x128xbf16>, vector<8x128xf32> -> vector<8x128xf32>
    %11 = vector.broadcast %0 : vector<1x128xf32> to vector<8x128xf32>
    %12 = arith.addf %10, %11 : vector<8x128xf32>
    %cst_11 = arith.constant 0.000000e+00 : f32
    %13 = vector.broadcast %cst_11 : f32 to vector<8x128xf32>
    %14 = arith.maximumf %12, %13 : vector<8x128xf32>
    %15 = arith.truncf %14 : vector<8x128xf32> to vector<8x128xbf16>
    %c1_12 = arith.constant 1 : index
    %c0_13 = arith.constant 0 : index
    %c0_14 = arith.constant 0 : index
    %16 = vector.load %arg1[%c1_12, %c0_13, %c0_14] : memref<4x128x128xbf16, #tpu.memory_space<vmem>>, vector<1x128x128xbf16>
    %17 = vector.shape_cast %16 : vector<1x128x128xbf16> to vector<128x128xbf16>
    %cst_15 = arith.constant dense<0.000000e+00> : vector<8x128xf32>
    %18 = tpu.matmul %15, %17, %cst_15 {dimension_numbers = #tpu.dot_dimension_numbers<[1], [0], [0], [1], [0, 0, 1, 1], [], []>} : vector<8x128xbf16>, vector<128x128xbf16>, vector<8x128xf32> -> vector<8x128xf32>
    %19 = vector.broadcast %1 : vector<1x128xf32> to vector<8x128xf32>
    %20 = arith.addf %18, %19 : vector<8x128xf32>
    %cst_16 = arith.constant 0.000000e+00 : f32
    %21 = vector.broadcast %cst_16 : f32 to vector<8x128xf32>
    %22 = arith.maximumf %20, %21 : vector<8x128xf32>
    %23 = arith.truncf %22 : vector<8x128xf32> to vector<8x128xbf16>
    %c2_17 = arith.constant 2 : index
    %c0_18 = arith.constant 0 : index
    %c0_19 = arith.constant 0 : index
    %24 = vector.load %arg1[%c2_17, %c0_18, %c0_19] : memref<4x128x128xbf16, #tpu.memory_space<vmem>>, vector<1x128x128xbf16>
    %25 = vector.shape_cast %24 : vector<1x128x128xbf16> to vector<128x128xbf16>
    %cst_20 = arith.constant dense<0.000000e+00> : vector<8x128xf32>
    %26 = tpu.matmul %23, %25, %cst_20 {dimension_numbers = #tpu.dot_dimension_numbers<[1], [0], [0], [1], [0, 0, 1, 1], [], []>} : vector<8x128xbf16>, vector<128x128xbf16>, vector<8x128xf32> -> vector<8x128xf32>
    %27 = vector.broadcast %2 : vector<1x128xf32> to vector<8x128xf32>
    %28 = arith.addf %26, %27 : vector<8x128xf32>
    %cst_21 = arith.constant dense<0.000000e+00> : vector<128xf32>
    %29 = vector.multi_reduction <add>, %28, %cst_21 [0] : vector<8x128xf32> to vector<128xf32>
    %30 = vector.shape_cast %29 : vector<128xf32> to vector<1x128xf32>
    %31 = arith.mulf %28, %28 : vector<8x128xf32>
    %cst_22 = arith.constant dense<0.000000e+00> : vector<128xf32>
    %32 = vector.multi_reduction <add>, %31, %cst_22 [0] : vector<8x128xf32> to vector<128xf32>
    %33 = vector.shape_cast %32 : vector<128xf32> to vector<1x128xf32>
    %cst_23 = arith.constant 1.250000e-01 : f32
    %34 = vector.broadcast %cst_23 : f32 to vector<1x128xf32>
    %35 = arith.mulf %30, %34 : vector<1x128xf32>
    %cst_24 = arith.constant 1.250000e-01 : f32
    %36 = vector.broadcast %cst_24 : f32 to vector<1x128xf32>
    %37 = arith.mulf %33, %36 : vector<1x128xf32>
    %38 = arith.mulf %35, %35 : vector<1x128xf32>
    %39 = arith.subf %37, %38 : vector<1x128xf32>
    %cst_25 = arith.constant 0.000000e+00 : f32
    %40 = vector.broadcast %cst_25 : f32 to vector<1x128xf32>
    %41 = arith.maximumf %39, %40 : vector<1x128xf32>
    %42 = vector.broadcast %35 : vector<1x128xf32> to vector<8x128xf32>
    %43 = arith.subf %28, %42 : vector<8x128xf32>
    %cst_26 = arith.constant 9.99999974E-6 : f32
    %44 = vector.broadcast %cst_26 : f32 to vector<1x128xf32>
    %45 = arith.addf %41, %44 : vector<1x128xf32>
    %46 = math.rsqrt %45 : vector<1x128xf32>
    %47 = arith.mulf %4, %46 : vector<1x128xf32>
    %48 = vector.broadcast %47 : vector<1x128xf32> to vector<8x128xf32>
    %49 = arith.mulf %43, %48 : vector<8x128xf32>
    %50 = vector.broadcast %5 : vector<1x128xf32> to vector<8x128xf32>
    %51 = arith.addf %49, %50 : vector<8x128xf32>
    %cst_27 = arith.constant 0.000000e+00 : f32
    %52 = vector.broadcast %cst_27 : f32 to vector<8x128xf32>
    %53 = arith.maximumf %51, %52 : vector<8x128xf32>
    %54 = arith.truncf %53 : vector<8x128xf32> to vector<8x128xbf16>
    %c3_28 = arith.constant 3 : index
    %c0_29 = arith.constant 0 : index
    %c0_30 = arith.constant 0 : index
    %55 = vector.load %arg1[%c3_28, %c0_29, %c0_30] : memref<4x128x128xbf16, #tpu.memory_space<vmem>>, vector<1x128x128xbf16>
    %56 = vector.shape_cast %55 : vector<1x128x128xbf16> to vector<128x128xbf16>
    %cst_31 = arith.constant dense<0.000000e+00> : vector<8x128xf32>
    %57 = tpu.matmul %54, %56, %cst_31 {dimension_numbers = #tpu.dot_dimension_numbers<[1], [0], [0], [1], [0, 0, 1, 1], [], []>} : vector<8x128xbf16>, vector<128x128xbf16>, vector<8x128xf32> -> vector<8x128xf32>
    %58 = vector.broadcast %3 : vector<1x128xf32> to vector<8x128xf32>
    %59 = arith.addf %57, %58 : vector<8x128xf32>
    %60 = vector.extract_strided_slice %59 {offsets = [0, 0], sizes = [8, 4], strides = [1, 1]} : vector<8x128xf32> to vector<8x4xf32>
    %c0_32 = arith.constant 0 : index
    %c0_33 = arith.constant 0 : index
    %61 = vector.load %arg3[%c0_32, %c0_33] : memref<8x4xf32, #tpu.memory_space<vmem>>, vector<8x4xf32>
    tpu.vector_store %arg3[%c0_32, %c0_33], %60 {strides = array<i32>} : memref<8x4xf32, #tpu.memory_space<vmem>>, vector<8x4xf32>,
    return
  }
}

</mosaic_0001>

<llo_original>
// kernel: dqn_forward.1
$region0: #{dqn_forward.1}
  #allocation0 [shape = 'u32[]', space=smem, size = 0x4, offset = 0x4, fixed_abs, tag = 'smem constant byte address 0x4 - core index']
  #allocation1 [shape = 'u32[144,128]{1,0:T(1,128)}', space=vmem, size = 0x12000, scoped, tag = 'internal scratch']
  %s0 = inlined_call_operand.hbm [shape: f32[8,16], index: 0, kind: input, shape index: {}]
  %s1 = inlined_call_operand.hbm [shape: bf16[4,128,128], index: 1, kind: input, shape index: {}]
  %s2 = inlined_call_operand.hbm [shape: f32[8,128], index: 2, kind: input, shape index: {}]
  %s3 = inlined_call_operand.vmem [shape: f32[8,4], index: 3, kind: output, shape index: {}]
  %s4 = sld [smem:[#allocation0]]
  $region34: #{dqn_forward.1} parent=0
    _
  %s6 = ssub.s32 1, %s4
  %s7 = scalar_select 0, %s6, %s4
  $region1: #{dqn_forward.1} parent=0
    #allocation2 [shape = 'u8[4096]{0}', space=vmem, size = 0x1000, scoped, tag = 'input window, operand 0, single buffered']
    #allocation3 [shape = 's32[1]{0}', space=sflag, size = 0x4, scoped, tag = 'scoped memory for dqn_forward.1']
    #allocation4 [shape = 'u8[131072]{0}', space=vmem, size = 0x20000, scoped, tag = 'input window, operand 1, single buffered']
    #allocation5 [shape = 's32[1]{0}', space=sflag, size = 0x4, scoped, tag = 'scoped memory for dqn_forward.1']
    #allocation6 [shape = 'u8[4096]{0}', space=vmem, size = 0x1000, scoped, tag = 'input window, operand 2, single buffered']
    %8 = vsyncpa [#allocation3], 0
    %9 = vsyncpa [#allocation5], 0
    // Predicated region
    $region2: #{dqn_forward.1} parent=1 // pred_check
      _
    $region3: #{dqn_forward.1} parent=1 // pred_check_branch
      %11 = sbr.rel (0) target = $region5
    $region4: #{dqn_forward.1} parent=1 // pred_region
      %s13 = ssub.s32 128, 128
      %14 = vsyncadd [#allocation3], %s13
      %s16 = sshll.u32 [#allocation2], 4
      %s17 = int_to_ptr.vmem [resolvable:$true] %s16
      %19 = dma.hbm_to_vmem [thread:$0]  %s0, 128, %s17, [#allocation3]
    $region5: #{dqn_forward.1} parent=1 // pred_fallthru
      _
    // Predicated region
    $region6: #{dqn_forward.1} parent=1 // pred_check
      _
    $region7: #{dqn_forward.1} parent=1 // pred_check_branch
      %21 = sbr.rel (0) target = $region9
    $region8: #{dqn_forward.1} parent=1 // pred_region
      %s23 = ssub.s32 4096, 4096
      %24 = vsyncadd [#allocation5], %s23
      %s25 = sshll.u32 [#allocation4], 4
      %s26 = int_to_ptr.vmem [resolvable:$true] %s25
      %31 = dma.hbm_to_vmem [thread:$0]  %s1, 4096, %s26, [#allocation5], 64, 64, 4
    $region9: #{dqn_forward.1} parent=1 // pred_fallthru
      _
    // Predicated region
    $region10: #{dqn_forward.1} parent=1 // pred_check
      _
    $region11: #{dqn_forward.1} parent=1 // pred_check_branch
      %33 = sbr.rel (0) target = $region13
    $region12: #{dqn_forward.1} parent=1 // pred_region
      %s35 = ssub.s32 128, 128
      %36 = vsyncadd [#allocation5], %s35
      %s38 = sshll.u32 [#allocation6], 4
      %s39 = int_to_ptr.vmem [resolvable:$true] %s38
      %41 = dma.hbm_to_vmem [thread:$0]  %s2, 128, %s39, [#allocation5]
    $region13: #{dqn_forward.1} parent=1 // pred_fallthru
      _
    // Predicated region
    $region14: #{dqn_forward.1} parent=1 // pred_check
      _
    $region15: #{dqn_forward.1} parent=1 // pred_check_branch
      %43 = sbr.rel (0) target = $region17
    $region16: #{dqn_forward.1} parent=1 // pred_region
      %44 = dma.done [#allocation3], 128
    $region17: #{dqn_forward.1} parent=1 // pred_fallthru
      _
    // Predicated region
    $region18: #{dqn_forward.1} parent=1 // pred_check
      _
    $region19: #{dqn_forward.1} parent=1 // pred_check_branch
      %46 = sbr.rel (0) target = $region21
    $region20: #{dqn_forward.1} parent=1 // pred_region
      %47 = dma.done [#allocation5], 4096
    $region21: #{dqn_forward.1} parent=1 // pred_fallthru
      _
    // Predicated region
    $region22: #{dqn_forward.1} parent=1 // pred_check
      _
    $region23: #{dqn_forward.1} parent=1 // pred_check_branch
      %49 = sbr.rel (0) target = $region25
    $region24: #{dqn_forward.1} parent=1 // pred_region
      %50 = dma.done [#allocation5], 128
    $region25: #{dqn_forward.1} parent=1 // pred_fallthru
      _
    %v52 = vld [vmem:[#allocation6] sm:$0x1]
    %v53 = vld [vmem:[#allocation6 + $0x1] sm:$0x1]
    %v54 = vld [vmem:[#allocation6 + $0x2] sm:$0x1]
    %v55 = vld [vmem:[#allocation6 + $0x3] sm:$0x1]
    %v56 = vld [vmem:[#allocation6 + $0x4] sm:$0x1]
    %v57 = vld [vmem:[#allocation6 + $0x5] sm:$0x1]
    %v58 = vld [vmem:[#allocation2] sm:$0xff]
    %v59 = vpack.c.bf16 %v58, %v58
    %v60 = vld [vmem:[#allocation4] sm:$0xf]
    %v61 = vld [vmem:[#allocation4 + $0x4] sm:$0xf]
    %v62 = vlaneseq
    %v63 = vshrl.u32 %v62, 7
    %v64 = vsub.s32 0, %v63
    %v65 = vrot.slane %v52, %v64
    %v68 = vunpack.c.l.b16 %v60
    %v69 = vunpack.c.l.b16 %v61
    %v70 = vpack.c.b16 %v69, %v68
    %vm72 = vcmask 130048
    %v74 = vsel %vm72, %v59, 0
    %76 = vmatprep.subr.bf16.mxu0 0
    %77 = vmatpush1.bf16.msra.mxu0 %v70
    %78 = vmatprep.subr.bf16.mxu0 0
    %79 = vmatpush1.bf16.msra.mxu0 0
    %80 = vmatprep.subr.bf16.mxu0 0
    %81 = vmatpush1.bf16.msra.mxu0 0
    %82 = vmatprep.subr.bf16.mxu0 0
    %83 = vmatpush1.bf16.msra.mxu0 0
    %84 = vmatprep.subr.bf16.mxu0 0
    %85 = vmatpush1.bf16.msra.mxu0 0
    %86 = vmatprep.subr.bf16.mxu0 0
    %87 = vmatpush1.bf16.msra.mxu0 0
    %88 = vmatprep.subr.bf16.mxu0 0
    %89 = vmatpush1.bf16.msra.mxu0 0
    %90 = vmatprep.subr.bf16.mxu0 0
    %91 = vmatpush1.bf16.msra.mxu0 0
    %92 = vmatprep.subr.bf16.mxu0 0
    %93 = vmatpush1.bf16.msra.mxu0 0
    %94 = vmatprep.subr.bf16.mxu0 0
    %95 = vmatpush1.bf16.msra.mxu0 0
    %96 = vmatprep.subr.bf16.mxu0 0
    %97 = vmatpush1.bf16.msra.mxu0 0
    %98 = vmatprep.subr.bf16.mxu0 0
    %99 = vmatpush1.bf16.msra.mxu0 0
    %100 = vmatprep.subr.bf16.mxu0 0
    %101 = vmatpush1.bf16.msra.mxu0 0
    %102 = vmatprep.subr.bf16.mxu0 0
    %103 = vmatpush1.bf16.msra.mxu0 0
    %104 = vmatprep.subr.bf16.mxu0 0
    %105 = vmatpush1.bf16.msra.mxu0 0
    %106 = vmatprep.subr.bf16.mxu0 0
    %107 = vmatpush1.bf16.msra.mxu0 0
    %108 = vmatprep.mubr.bf16.mxu0 0
    %109 = vmatmul.mubr.bf16.gmra.mrb[0].mxu0 %v74
    %v110 = vpop.f32.mrb[0].mxu0
    %v111 = vadd.f32 %v65, %v110
    %v112 = vpop.f32.mrb[0].mxu0
    %v113 = vpop.f32.mrb[0].mxu0
    %v114 = vpop.f32.mrb[0].mxu0
    %115 = vdwg.mxu0
    %v116 = vmax.f32 %v111, 0.0
    %v117 = vpack.c.bf16 %v116, %v116
    %s118 = scalar_lea.vmem [#allocation4], 64
    %v119 = vld [vmem:[%s118] sm:$0xf]
    %v120 = vld [vmem:[%s118 + $0x4] sm:$0xf]
    %v121 = vld [vmem:[%s118 + $0x8] sm:$0xf]
    %v122 = vld [vmem:[%s118 + $0xc] sm:$0xf]
    %v123 = vld [vmem:[%s118 + $0x10] sm:$0xf]
    %v124 = vld [vmem:[%s118 + $0x14] sm:$0xf]
    %v125 = vld [vmem:[%s118 + $0x18] sm:$0xf]
    %v126 = vld [vmem:[%s118 + $0x1c] sm:$0xf]
    %v127 = vld [vmem:[%s118 + $0x20] sm:$0xf]
    %v128 = vld [vmem:[%s118 + $0x24] sm:$0xf]
    %v129 = vld [vmem:[%s118 + $0x28] sm:$0xf]
    %v130 = vld [vmem:[%s118 + $0x2c] sm:$0xf]
    %v131 = vld [vmem:[%s118 + $0x30] sm:$0xf]
    %v132 = vld [vmem:[%s118 + $0x34] sm:$0xf]
    %v133 = vld [vmem:[%s118 + $0x38] sm:$0xf]
    %v134 = vld [vmem:[%s118 + $0x3c] sm:$0xf]
    %v135 = vlaneseq
    %v136 = vshrl.u32 %v135, 7
    %v137 = vsub.s32 0, %v136
    %v138 = vrot.slane %v53, %v137
    %v155 = vunpack.c.l.b16 %v119
    %v156 = vunpack.c.l.b16 %v120
    %v157 = vunpack.c.l.b16 %v121
    %v158 = vunpack.c.l.b16 %v122
    %v159 = vunpack.c.l.b16 %v123
    %v160 = vunpack.c.l.b16 %v124
    %v161 = vunpack.c.l.b16 %v125
    %v162 = vunpack.c.l.b16 %v126
    %v163 = vunpack.c.l.b16 %v127
    %v164 = vunpack.c.l.b16 %v128
    %v165 = vunpack.c.l.b16 %v129
    %v166 = vunpack.c.l.b16 %v130
    %v167 = vunpack.c.l.b16 %v131
    %v168 = vunpack.c.l.b16 %v132
    %v169 = vunpack.c.l.b16 %v133
    %v170 = vunpack.c.l.b16 %v134
    %v171 = vpack.c.b16 %v156, %v155
    %v172 = vpack.c.b16 %v158, %v157
    %v173 = vpack.c.b16 %v160, %v159
    %v174 = vpack.c.b16 %v162, %v161
    %v175 = vpack.c.b16 %v164, %v163
    %v176 = vpack.c.b16 %v166, %v165
    %v177 = vpack.c.b16 %v168, %v167
    %v178 = vpack.c.b16 %v170, %v169
    %187 = vmatprep.subr.bf16.mxu0 0
    %188 = vmatpush1.bf16.msra.mxu0 %v171
    %189 = vmatprep.subr.bf16.mxu0 0
    %190 = vmatpush1.bf16.msra.mxu0 %v172
    %191 = vmatprep.subr.bf16.mxu0 0
    %192 = vmatpush1.bf16.msra.mxu0 %v173
    %193 = vmatprep.subr.bf16.mxu0 0
    %194 = vmatpush1.bf16.msra.mxu0 %v174
    %195 = vmatprep.subr.bf16.mxu0 0
    %196 = vmatpush1.bf16.msra.mxu0 %v175
    %197 = vmatprep.subr.bf16.mxu0 0
    %198 = vmatpush1.bf16.msra.mxu0 %v176
    %199 = vmatprep.subr.bf16.mxu0 0
    %200 = vmatpush1.bf16.msra.mxu0 %v177
    %201 = vmatprep.subr.bf16.mxu0 0
    %202 = vmatpush1.bf16.msra.mxu0 %v178
    %203 = vmatprep.subr.bf16.mxu0 0
    %204 = vmatpush1.bf16.msra.mxu0 0
    %205 = vmatprep.subr.bf16.mxu0 0
    %206 = vmatpush1.bf16.msra.mxu0 0
    %207 = vmatprep.subr.bf16.mxu0 0
    %208 = vmatpush1.bf16.msra.mxu0 0
    %209 = vmatprep.subr.bf16.mxu0 0
    %210 = vmatpush1.bf16.msra.mxu0 0
    %211 = vmatprep.subr.bf16.mxu0 0
    %212 = vmatpush1.bf16.msra.mxu0 0
    %213 = vmatprep.subr.bf16.mxu0 0
    %214 = vmatpush1.bf16.msra.mxu0 0
    %215 = vmatprep.subr.bf16.mxu0 0
    %216 = vmatpush1.bf16.msra.mxu0 0
    %217 = vmatprep.subr.bf16.mxu0 0
    %218 = vmatpush1.bf16.msra.mxu0 0
    %219 = vmatprep.mubr.bf16.mxu0 0
    %220 = vmatmul.mubr.bf16.gmra.mrb[0].mxu0 %v117
    %v221 = vpop.f32.mrb[0].mxu0
    %v222 = vadd.f32 %v138, %v221
    %v223 = vpop.f32.mrb[0].mxu0
    %v224 = vpop.f32.mrb[0].mxu0
    %v225 = vpop.f32.mrb[0].mxu0
    %226 = vdwg.mxu0
    %v227 = vmax.f32 %v222, 0.0
    %v228 = vpack.c.bf16 %v227, %v227
    %s229 = scalar_lea.vmem [#allocation4], 128
    %v230 = vld [vmem:[%s229] sm:$0xf]
    %v231 = vld [vmem:[%s229 + $0x4] sm:$0xf]
    %v232 = vld [vmem:[%s229 + $0x8] sm:$0xf]
    %v233 = vld [vmem:[%s229 + $0xc] sm:$0xf]
    %v234 = vld [vmem:[%s229 + $0x10] sm:$0xf]
    %v235 = vld [vmem:[%s229 + $0x14] sm:$0xf]
    %v236 = vld [vmem:[%s229 + $0x18] sm:$0xf]
    %v237 = vld [vmem:[%s229 + $0x1c] sm:$0xf]
    %v238 = vld [vmem:[%s229 + $0x20] sm:$0xf]
    %v239 = vld [vmem:[%s229 + $0x24] sm:$0xf]
    %v240 = vld [vmem:[%s229 + $0x28] sm:$0xf]
    %v241 = vld [vmem:[%s229 + $0x2c] sm:$0xf]
    %v242 = vld [vmem:[%s229 + $0x30] sm:$0xf]
    %v243 = vld [vmem:[%s229 + $0x34] sm:$0xf]
    %v244 = vld [vmem:[%s229 + $0x38] sm:$0xf]
    %v245 = vld [vmem:[%s229 + $0x3c] sm:$0xf]
    %v246 = vlaneseq
    %v247 = vshrl.u32 %v246, 7
    %v248 = vsub.s32 0, %v247
    %v249 = vrot.slane %v54, %v248
    %v266 = vunpack.c.l.b16 %v230
    %v267 = vunpack.c.l.b16 %v231
    %v268 = vunpack.c.l.b16 %v232
    %v269 = vunpack.c.l.b16 %v233
    %v270 = vunpack.c.l.b16 %v234
    %v271 = vunpack.c.l.b16 %v235
    %v272 = vunpack.c.l.b16 %v236
    %v273 = vunpack.c.l.b16 %v237
    %v274 = vunpack.c.l.b16 %v238
    %v275 = vunpack.c.l.b16 %v239
    %v276 = vunpack.c.l.b16 %v240
    %v277 = vunpack.c.l.b16 %v241
    %v278 = vunpack.c.l.b16 %v242
    %v279 = vunpack.c.l.b16 %v243
    %v280 = vunpack.c.l.b16 %v244
    %v281 = vunpack.c.l.b16 %v245
    %v282 = vpack.c.b16 %v267, %v266
    %v283 = vpack.c.b16 %v269, %v268
    %v284 = vpack.c.b16 %v271, %v270
    %v285 = vpack.c.b16 %v273, %v272
    %v286 = vpack.c.b16 %v275, %v274
    %v287 = vpack.c.b16 %v277, %v276
    %v288 = vpack.c.b16 %v279, %v278
    %v289 = vpack.c.b16 %v281, %v280
    %298 = vmatprep.subr.bf16.mxu0 0
    %299 = vmatpush1.bf16.msra.mxu0 %v282
    %300 = vmatprep.subr.bf16.mxu0 0
    %301 = vmatpush1.bf16.msra.mxu0 %v283
    %302 = vmatprep.subr.bf16.mxu0 0
    %303 = vmatpush1.bf16.msra.mxu0 %v284
    %304 = vmatprep.subr.bf16.mxu0 0
    %305 = vmatpush1.bf16.msra.mxu0 %v285
    %306 = vmatprep.subr.bf16.mxu0 0
    %307 = vmatpush1.bf16.msra.mxu0 %v286
    %308 = vmatprep.subr.bf16.mxu0 0
    %309 = vmatpush1.bf16.msra.mxu0 %v287
    %310 = vmatprep.subr.bf16.mxu0 0
    %311 = vmatpush1.bf16.msra.mxu0 %v288
    %312 = vmatprep.subr.bf16.mxu0 0
    %313 = vmatpush1.bf16.msra.mxu0 %v289
    %314 = vmatprep.subr.bf16.mxu0 0
    %315 = vmatpush1.bf16.msra.mxu0 0
    %316 = vmatprep.subr.bf16.mxu0 0
    %317 = vmatpush1.bf16.msra.mxu0 0
    %318 = vmatprep.subr.bf16.mxu0 0
    %319 = vmatpush1.bf16.msra.mxu0 0
    %320 = vmatprep.subr.bf16.mxu0 0
    %321 = vmatpush1.bf16.msra.mxu0 0
    %322 = vmatprep.subr.bf16.mxu0 0
    %323 = vmatpush1.bf16.msra.mxu0 0
    %324 = vmatprep.subr.bf16.mxu0 0
    %325 = vmatpush1.bf16.msra.mxu0 0
    %326 = vmatprep.subr.bf16.mxu0 0
    %327 = vmatpush1.bf16.msra.mxu0 0
    %328 = vmatprep.subr.bf16.mxu0 0
    %329 = vmatpush1.bf16.msra.mxu0 0
    %330 = vmatprep.mubr.bf16.mxu0 0
    %331 = vmatmul.mubr.bf16.gmra.mrb[0].mxu0 %v228
    %v332 = vpop.f32.mrb[0].mxu0
    %v333 = vadd.f32 %v249, %v332
    %v334 = vpop.f32.mrb[0].mxu0
    %v335 = vpop.f32.mrb[0].mxu0
    %v336 = vpop.f32.mrb[0].mxu0
    %337 = vdwg.mxu0
    %v338 = vrot.slane %v333, 4
    %v339 = vadd.f32 %v333, %v338
    %v340 = vrot.slane %v339, 2
    %v341 = vadd.f32 %v339, %v340
    %v342 = vrot.slane %v341, 1
    %v343 = vadd.f32 %v341, %v342
    %v344 = vmul.f32 %v333, %v333
    %v345 = vrot.slane %v344, 4
    %v346 = vadd.f32 %v344, %v345
    %v347 = vrot.slane %v346, 2
    %v348 = vadd.f32 %v346, %v347
    %v349 = vrot.slane %v348, 1
    %v350 = vadd.f32 %v348, %v349
    %v351 = vmul.f32 %v343, 0.125
    %v352 = vmul.f32 %v350, 0.125
    %v353 = vmul.f32 %v351, %v351
    %v354 = vsub.f32 %v352, %v353
    %v355 = vmax.f32 %v354, 0.0
    %v356 = vsub.f32 %v333, %v351
    %v357 = vadd.f32 %v355, 1e-05
    %v358 = vrsqrt.pop %v357
    %v359 = vmul.f32 %v56, %v358
    %v360 = vlaneseq
    %v361 = vshrl.u32 %v360, 7
    %v362 = vsub.s32 0, %v361
    %v363 = vrot.slane %v359, %v362
    %v364 = vmul.f32 %v356, %v363
    %v365 = vlaneseq
    %v366 = vshrl.u32 %v365, 7
    %v367 = vsub.s32 0, %v366
    %v368 = vrot.slane %v57, %v367
    %v369 = vadd.f32 %v364, %v368
    %v370 = vmax.f32 %v369, 0.0
    %v371 = vpack.c.bf16 %v370, %v370
    %s372 = scalar_lea.vmem [#allocation4], 192
    %v373 = vld [vmem:[%s372] sm:$0xf]
    %v374 = vld [vmem:[%s372 + $0x4] sm:$0xf]
    %v375 = vld [vmem:[%s372 + $0x8] sm:$0xf]
    %v376 = vld [vmem:[%s372 + $0xc] sm:$0xf]
    %v377 = vld [vmem:[%s372 + $0x10] sm:$0xf]
    %v378 = vld [vmem:[%s372 + $0x14] sm:$0xf]
    %v379 = vld [vmem:[%s372 + $0x18] sm:$0xf]
    %v380 = vld [vmem:[%s372 + $0x1c] sm:$0xf]
    %v381 = vld [vmem:[%s372 + $0x20] sm:$0xf]
    %v382 = vld [vmem:[%s372 + $0x24] sm:$0xf]
    %v383 = vld [vmem:[%s372 + $0x28] sm:$0xf]
    %v384 = vld [vmem:[%s372 + $0x2c] sm:$0xf]
    %v385 = vld [vmem:[%s372 + $0x30] sm:$0xf]
    %v386 = vld [vmem:[%s372 + $0x34] sm:$0xf]
    %v387 = vld [vmem:[%s372 + $0x38] sm:$0xf]
    %v388 = vld [vmem:[%s372 + $0x3c] sm:$0xf]
    %v389 = vlaneseq
    %v390 = vshrl.u32 %v389, 7
    %v391 = vsub.s32 0, %v390
    %v392 = vrot.slane %v55, %v391
    %v409 = vunpack.c.l.b16 %v373
    %v410 = vunpack.c.l.b16 %v374
    %v411 = vunpack.c.l.b16 %v375
    %v412 = vunpack.c.l.b16 %v376
    %v413 = vunpack.c.l.b16 %v377
    %v414 = vunpack.c.l.b16 %v378
    %v415 = vunpack.c.l.b16 %v379
    %v416 = vunpack.c.l.b16 %v380
    %v417 = vunpack.c.l.b16 %v381
    %v418 = vunpack.c.l.b16 %v382
    %v419 = vunpack.c.l.b16 %v383
    %v420 = vunpack.c.l.b16 %v384
    %v421 = vunpack.c.l.b16 %v385
    %v422 = vunpack.c.l.b16 %v386
    %v423 = vunpack.c.l.b16 %v387
    %v424 = vunpack.c.l.b16 %v388
    %v425 = vpack.c.b16 %v410, %v409
    %v426 = vpack.c.b16 %v412, %v411
    %v427 = vpack.c.b16 %v414, %v413
    %v428 = vpack.c.b16 %v416, %v415
    %v429 = vpack.c.b16 %v418, %v417
    %v430 = vpack.c.b16 %v420, %v419
    %v431 = vpack.c.b16 %v422, %v421
    %v432 = vpack.c.b16 %v424, %v423
    %441 = vmatprep.subr.bf16.mxu0 0
    %442 = vmatpush1.bf16.msra.mxu0 %v425
    %443 = vmatprep.subr.bf16.mxu0 0
    %444 = vmatpush1.bf16.msra.mxu0 %v426
    %445 = vmatprep.subr.bf16.mxu0 0
    %446 = vmatpush1.bf16.msra.mxu0 %v427
    %447 = vmatprep.subr.bf16.mxu0 0
    %448 = vmatpush1.bf16.msra.mxu0 %v428
    %449 = vmatprep.subr.bf16.mxu0 0
    %450 = vmatpush1.bf16.msra.mxu0 %v429
    %451 = vmatprep.subr.bf16.mxu0 0
    %452 = vmatpush1.bf16.msra.mxu0 %v430
    %453 = vmatprep.subr.bf16.mxu0 0
    %454 = vmatpush1.bf16.msra.mxu0 %v431
    %455 = vmatprep.subr.bf16.mxu0 0
    %456 = vmatpush1.bf16.msra.mxu0 %v432
    %457 = vmatprep.subr.bf16.mxu0 0
    %458 = vmatpush1.bf16.msra.mxu0 0
    %459 = vmatprep.subr.bf16.mxu0 0
    %460 = vmatpush1.bf16.msra.mxu0 0
    %461 = vmatprep.subr.bf16.mxu0 0
    %462 = vmatpush1.bf16.msra.mxu0 0
    %463 = vmatprep.subr.bf16.mxu0 0
    %464 = vmatpush1.bf16.msra.mxu0 0
    %465 = vmatprep.subr.bf16.mxu0 0
    %466 = vmatpush1.bf16.msra.mxu0 0
    %467 = vmatprep.subr.bf16.mxu0 0
    %468 = vmatpush1.bf16.msra.mxu0 0
    %469 = vmatprep.subr.bf16.mxu0 0
    %470 = vmatpush1.bf16.msra.mxu0 0
    %471 = vmatprep.subr.bf16.mxu0 0
    %472 = vmatpush1.bf16.msra.mxu0 0
    %473 = vmatprep.mubr.bf16.mxu0 0
    %474 = vmatmul.mubr.bf16.gmra.mrb[0].mxu0 %v371
    %v475 = vpop.f32.mrb[0].mxu0
    %v476 = vadd.f32 %v392, %v475
    %v477 = vpop.f32.mrb[0].mxu0
    %v478 = vpop.f32.mrb[0].mxu0
    %v479 = vpop.f32.mrb[0].mxu0
    %480 = vdwg.mxu0
    %vm481 = vcmask 31744
    %482 = vst.msk [vmem:[%s3] sm:$0xff] %vm481, %v476
    // Predicated region
    $region26: #{dqn_forward.1} parent=1 // pred_check
      _
    $region27: #{dqn_forward.1} parent=1 // pred_check_branch
      %484 = sbr.rel (0) target = $region29
    $region28: #{dqn_forward.1} parent=1 // pred_region
      _
    $region29: #{dqn_forward.1} parent=1 // pred_fallthru
      _
    // Predicated region
    $region30: #{dqn_forward.1} parent=1 // pred_check
      _
    $region31: #{dqn_forward.1} parent=1 // pred_check_branch
      %486 = sbr.rel (0) target = $region33
    $region32: #{dqn_forward.1} parent=1 // pred_region
      _
    $region33: #{dqn_forward.1} parent=1 // pred_fallthru
      _
    %487 = vsyncpa [#allocation3], 1
    %488 = vsyncpa [#allocation5], 1

</llo_original>
